<compile_context>
chip_gen: v5e
topology: v5e:2x2
jax: 0.10.0
libtpu: 0.0.40
codegen_flags: <defaults>
</compile_context>

<pallas_src>
import jax
import jax.numpy as jnp
from jax import lax
from jax.experimental import pallas as pl
from jax.experimental.pallas import tpu as pltpu

HIDDEN = 100      # matches nn.Linear(1, 100)
H_PAD = 104       # hidden padded to a sublane multiple (13 x 8); rows 100..103 are zero
CHUNK = 256       # lanes per inner chunk: (104, 256) f32 = 26 vregs per intermediate
TN_MAX = 8192     # max lanes per grid step (multiple of CHUNK)


def _mlp_kernel(x_ref, w1_ref, b1_ref, w2_ref, b2_ref, o_ref):
    # x:  (1, TN)      batch on lanes
    # w1: (H_PAD, 1)   b1: (H_PAD, 1)   w2: (H_PAD, 1)   (hidden on sublanes)
    # b2: (1, 1) scalar in SMEM
    # o:  (1, TN)
    w1 = w1_ref[...]            # hoisted, loop-invariant
    b1 = b1_ref[...]
    w2 = w2_ref[...]
    b2 = b2_ref[0, 0]

    n_chunks = x_ref.shape[1] // CHUNK

    def body(c, carry):
        off = pl.multiple_of(c * CHUNK, CHUNK)               # 128-aligned lane offset
        x_c = x_ref[:, pl.ds(off, CHUNK)]                    # (1, CHUNK)
        pre = w1 * x_c + b1                                  # (H_PAD, CHUNK)  VPU
        h = jnp.tanh(pre)                                    # EUP
        y = jnp.sum(h * w2, axis=0, keepdims=True)           # (1, CHUNK) sublane reduce
        o_ref[:, pl.ds(off, CHUNK)] = y + b2                 # aligned unmasked store
        return carry

    lax.fori_loop(0, n_chunks, body, 0, unroll=True)


def _round_up(a, b):
    return ((a + b - 1) // b) * b


def _choose_tile(n):
    """Lane-multiple grid tile; >=2 grid steps (2-TC sharding) once n > CHUNK."""
    n_pad = _round_up(n, CHUNK)
    if n_pad <= CHUNK:
        return CHUNK
    return min(TN_MAX, _round_up(pl.cdiv(n_pad, 2), CHUNK))


def solver_forward(x, w1, b1, w2, b2):
    """x: (N, 1); w1: (1, 100); b1: (100,); w2: (100, 1); b2: (1,) -> (N, 1)."""
    n = x.shape[0]
    tn = _choose_tile(n)
    grid = (pl.cdiv(n, tn),)

    # Batch on lanes; free reshape, no pad copy (Pallas handles the tail block).
    x_row = x.reshape(1, n).astype(jnp.float32)

    # Hidden axis on sublanes, zero-padded 100 -> 104 (inert: padded w2 rows = 0).
    w1_col = jnp.zeros((H_PAD, 1), jnp.float32).at[:HIDDEN, 0].set(w1[0, :])
    b1_col = jnp.zeros((H_PAD, 1), jnp.float32).at[:HIDDEN, 0].set(b1)
    w2_col = jnp.zeros((H_PAD, 1), jnp.float32).at[:HIDDEN, 0].set(w2[:, 0])
    b2_smem = b2.reshape(1, 1).astype(jnp.float32)

    out_row = pl.pallas_call(
        _mlp_kernel,
        out_shape=jax.ShapeDtypeStruct((1, n), jnp.float32),
        grid=grid,
        in_specs=[
            pl.BlockSpec((1, tn), lambda i: (0, i)),            # x tile (lane-dense)
            pl.BlockSpec((H_PAD, 1), lambda i: (0, 0)),         # w1 (resident)
            pl.BlockSpec((H_PAD, 1), lambda i: (0, 0)),         # b1 (resident)
            pl.BlockSpec((H_PAD, 1), lambda i: (0, 0)),         # w2 (resident)
            pl.BlockSpec(memory_space=pltpu.MemorySpace.SMEM),  # b2 scalar
        ],
        out_specs=pl.BlockSpec((1, tn), lambda i: (0, i)),      # lane-dense store
        compiler_params=pltpu.CompilerParams(
            dimension_semantics=("parallel",),                   # 2-TC shard on v7x
            vmem_limit_bytes=32 * 1024 * 1024,                   # safe on v5e/v6e/v7x
        ),
    )(x_row, w1_col, b1_col, w2_col, b2_smem)

    return out_row.reshape(n, 1)


def init_params(key):
    """Deterministic init mirroring nn.Linear's uniform(-1/sqrt(fan_in), ...)."""
    k1, k2, k3, k4 = jax.random.split(key, 4)
    bound1 = 1.0 / jnp.sqrt(1.0)     # fan_in = 1
    bound2 = 1.0 / jnp.sqrt(100.0)   # fan_in = 100
    w1 = jax.random.uniform(k1, (1, HIDDEN), jnp.float32, -bound1, bound1)
    b1 = jax.random.uniform(k2, (HIDDEN,), jnp.float32, -bound1, bound1)
    w2 = jax.random.uniform(k3, (HIDDEN, 1), jnp.float32, -bound2, bound2)
    b2 = jax.random.uniform(k4, (1,), jnp.float32, -bound2, bound2)
    return w1, b1, w2, b2


if __name__ == "__main__":
    key = jax.random.PRNGKey(0)
    k_in, k_in2, k_params = jax.random.split(key, 3)
    w1, b1, w2, b2 = init_params(k_params)

    def ref_forward(xx):
        return jnp.tanh(xx @ w1 + b1[None, :]) @ w2 + b2[None, :]

    # Small case (single tile, single chunk, partial tail lanes).
    N = 8
    x = jax.random.normal(k_in, (N, 1), jnp.float32)
    out = solver_forward(x, w1, b1, w2, b2)
    jax.block_until_ready(out)
    assert out.shape == (N, 1)
    assert jnp.allclose(out, ref_forward(x), atol=1e-5, rtol=1e-5), "mismatch (N=8)"

    # Grid-exercising case: 2 grid steps, multi-chunk inner loop, ragged tail block.
    N2 = 4100
    x2 = jax.random.normal(k_in2, (N2, 1), jnp.float32)
    out2 = solver_forward(x2, w1, b1, w2, b2)
    jax.block_until_ready(out2)
    assert out2.shape == (N2, 1)
    assert jnp.allclose(out2, ref_forward(x2), atol=1e-5, rtol=1e-5), "mismatch (N=4100)"

    print("KERNEL_OK")
</pallas_src>

<mosaic_0001>
module attributes {stable_mosaic.version = 11 : i64} {
  func.func @_mlp_kernel(%arg0: i32, %arg1: memref<1x256xf32, #tpu.memory_space<vmem>>, %arg2: memref<104x1xf32, #tpu.memory_space<vmem>>, %arg3: memref<104x1xf32, #tpu.memory_space<vmem>>, %arg4: memref<104x1xf32, #tpu.memory_space<vmem>>, %arg5: memref<1x1xf32, #tpu.memory_space<smem>>, %arg6: memref<1x256xf32, #tpu.memory_space<vmem>>) attributes {dimension_semantics = [#tpu.dimension_semantics<parallel>], iteration_bounds = array<i64: 1>, scalar_prefetch = 0 : i64, scratch_operands = 0 : i64, tpu.core_type = #tpu.core_type<tc>, window_params = [{transform_indices = @transform_0, window_bounds = array<i64: 1, 256>}, {pipeline_mode = #tpu.pipeline_mode<synchronous>, transform_indices = @transform_1, window_bounds = array<i64: 104, 1>}, {pipeline_mode = #tpu.pipeline_mode<synchronous>, transform_indices = @transform_2, window_bounds = array<i64: 104, 1>}, {pipeline_mode = #tpu.pipeline_mode<synchronous>, transform_indices = @transform_3, window_bounds = array<i64: 104, 1>}, {transform_indices = @transform_4, window_bounds = array<i64: 1, 1>}, {transform_indices = @transform_5, window_bounds = array<i64: 1, 256>}]} {
    %c0 = arith.constant 0 : index
    %c0_0 = arith.constant 0 : index
    %0 = vector.load %arg2[%c0, %c0_0] : memref<104x1xf32, #tpu.memory_space<vmem>>, vector<104x1xf32>
    %c0_1 = arith.constant 0 : index
    %c0_2 = arith.constant 0 : index
    %1 = vector.load %arg3[%c0_1, %c0_2] : memref<104x1xf32, #tpu.memory_space<vmem>>, vector<104x1xf32>
    %c0_3 = arith.constant 0 : index
    %c0_4 = arith.constant 0 : index
    %2 = vector.load %arg4[%c0_3, %c0_4] : memref<104x1xf32, #tpu.memory_space<vmem>>, vector<104x1xf32>
    %c0_5 = arith.constant 0 : index
    %c0_6 = arith.constant 0 : index
    %3 = memref.load %arg5[%c0_5, %c0_6] : memref<1x1xf32, #tpu.memory_space<smem>>
    %c0_i32 = arith.constant 0 : i32
    %c256_i32 = arith.constant 256 : i32
    %4 = arith.muli %c0_i32, %c256_i32 : i32
    %5 = tpu.assume_multiple %4, 256 : i32
    %c0_7 = arith.constant 0 : index
    %6 = arith.index_cast %5 : i32 to index
    %7 = vector.load %arg1[%c0_7, %6] : memref<1x256xf32, #tpu.memory_space<vmem>>, vector<1x256xf32>
    %8 = vector.broadcast %0 : vector<104x1xf32> to vector<104x256xf32>
    %9 = vector.broadcast %7 : vector<1x256xf32> to vector<104x256xf32>
    %10 = arith.mulf %8, %9 : vector<104x256xf32>
    %11 = vector.broadcast %1 : vector<104x1xf32> to vector<104x256xf32>
    %12 = arith.addf %10, %11 : vector<104x256xf32>
    %13 = math.tanh %12 : vector<104x256xf32>
    %14 = vector.broadcast %2 : vector<104x1xf32> to vector<104x256xf32>
    %15 = arith.mulf %13, %14 : vector<104x256xf32>
    %cst = arith.constant dense<0.000000e+00> : vector<256xf32>
    %16 = vector.multi_reduction <add>, %15, %cst [0] : vector<104x256xf32> to vector<256xf32>
    %17 = vector.shape_cast %16 : vector<256xf32> to vector<1x256xf32>
    %18 = vector.broadcast %3 : f32 to vector<1x256xf32>
    %19 = arith.addf %17, %18 : vector<1x256xf32>
    %c0_8 = arith.constant 0 : index
    %20 = arith.index_cast %5 : i32 to index
    %21 = vector.load %arg6[%c0_8, %20] : memref<1x256xf32, #tpu.memory_space<vmem>>, vector<1x256xf32>
    tpu.vector_store %arg6[%c0_8, %20], %19 {strides = array<i32>} : memref<1x256xf32, #tpu.memory_space<vmem>>, vector<1x256xf32>,
    %c1_i32 = arith.constant 1 : i32
    return
  }
  func.func @transform_0(%arg0: i32) -> (i32, i32) {
    %c0_i32 = arith.constant 0 : i32
    %c0_i32_0 = arith.constant 0 : i32
    return %c0_i32, %arg0 : i32, i32
  }
  func.func @transform_1(%arg0: i32) -> (i32, i32) {
    %c0_i32 = arith.constant 0 : i32
    %c0_i32_0 = arith.constant 0 : i32
    %c0_i32_1 = arith.constant 0 : i32
    return %c0_i32, %c0_i32_0 : i32, i32
  }
  func.func @transform_2(%arg0: i32) -> (i32, i32) {
    %c0_i32 = arith.constant 0 : i32
    %c0_i32_0 = arith.constant 0 : i32
    %c0_i32_1 = arith.constant 0 : i32
    return %c0_i32, %c0_i32_0 : i32, i32
  }
  func.func @transform_3(%arg0: i32) -> (i32, i32) {
    %c0_i32 = arith.constant 0 : i32
    %c0_i32_0 = arith.constant 0 : i32
    %c0_i32_1 = arith.constant 0 : i32
    return %c0_i32, %c0_i32_0 : i32, i32
  }
  func.func @transform_4(%arg0: i32) -> (i32, i32) {
    %c0_i32 = arith.constant 0 : i32
    %c0_i32_0 = arith.constant 0 : i32
    %c0_i32_1 = arith.constant 0 : i32
    return %c0_i32, %c0_i32_0 : i32, i32
  }
  func.func @transform_5(%arg0: i32) -> (i32, i32) {
    %c0_i32 = arith.constant 0 : i32
    %c0_i32_0 = arith.constant 0 : i32
    return %c0_i32, %arg0 : i32, i32
  }
}

</mosaic_0001>

<llo_original>
// kernel: tpu_custom_call.1
$region0: #{tpu_custom_call.1}
  #allocation0 [shape = 'u32[]', space=smem, size = 0x4, offset = 0x4, fixed_abs, tag = 'smem constant byte address 0x4 - core index']
  #allocation1 [shape = 'u32[72,128]{1,0:T(1,128)}', space=vmem, size = 0x9000, scoped, tag = 'internal scratch']
  #allocation2 [shape = 'f32[1,1]{1,0:T(1,128)S(6)}', space=smem, size = 0x200, scoped, tag = 'scoped memory for tpu_custom_call.1']
  %s0 = inlined_call_operand.vmem [shape: f32[1,8], index: 0, kind: input, shape index: {}]
  %s1 = inlined_call_operand.vmem [shape: f32[104,1], index: 1, kind: input, shape index: {}]
  %s2 = inlined_call_operand.vmem [shape: f32[104,1], index: 2, kind: input, shape index: {}]
  %s3 = inlined_call_operand.vmem [shape: f32[104,1], index: 3, kind: input, shape index: {}]
  %s4 = inlined_call_operand.<no memory space> [shape: f32[1,1], index: 4, kind: input, shape index: {}]
  %s5 = inlined_call_operand.hbm [shape: f32[1,8], index: 5, kind: output, shape index: {}]
  %s6 = sld [smem:[#allocation0]]
  $region30: #{tpu_custom_call.1} parent=0
    _
  %s8 = ssub.s32 1, %s6
  %s9 = scalar_select 0, %s8, %s6
  %10 = sst [smem:[#allocation2]] %s4
  $region1: #{tpu_custom_call.1} parent=0
    #allocation3 [shape = 'u8[1024]{0}', space=vmem, size = 0x400, scoped, tag = 'output window, operand 0, single buffered']
    #allocation4 [shape = 's32[1]{0}', space=sflag, size = 0x4, scoped, tag = 'scoped memory for tpu_custom_call.1']
    %11 = vsyncpa [#allocation4], 0
    // Predicated region
    $region2: #{tpu_custom_call.1} parent=1 // pred_check
      _
    $region3: #{tpu_custom_call.1} parent=1 // pred_check_branch
      %13 = sbr.rel (0) target = $region5
    $region4: #{tpu_custom_call.1} parent=1 // pred_region
      _
    $region5: #{tpu_custom_call.1} parent=1 // pred_fallthru
      _
    // Predicated region
    $region6: #{tpu_custom_call.1} parent=1 // pred_check
      _
    $region7: #{tpu_custom_call.1} parent=1 // pred_check_branch
      %15 = sbr.rel (0) target = $region9
    $region8: #{tpu_custom_call.1} parent=1 // pred_region
      _
    $region9: #{tpu_custom_call.1} parent=1 // pred_fallthru
      _
    // Predicated region
    $region10: #{tpu_custom_call.1} parent=1 // pred_check
      _
    $region11: #{tpu_custom_call.1} parent=1 // pred_check_branch
      %17 = sbr.rel (0) target = $region13
    $region12: #{tpu_custom_call.1} parent=1 // pred_region
      _
    $region13: #{tpu_custom_call.1} parent=1 // pred_fallthru
      _
    // Predicated region
    $region14: #{tpu_custom_call.1} parent=1 // pred_check
      _
    $region15: #{tpu_custom_call.1} parent=1 // pred_check_branch
      %19 = sbr.rel (0) target = $region17
    $region16: #{tpu_custom_call.1} parent=1 // pred_region
      _
    $region17: #{tpu_custom_call.1} parent=1 // pred_fallthru
      _
    // Predicated region
    $region18: #{tpu_custom_call.1} parent=1 // pred_check
      _
    $region19: #{tpu_custom_call.1} parent=1 // pred_check_branch
      %21 = sbr.rel (0) target = $region21
    $region20: #{tpu_custom_call.1} parent=1 // pred_region
      _
    $region21: #{tpu_custom_call.1} parent=1 // pred_fallthru
      _
    %v22 = vld [vmem:[%s1] sm:$0xff]
    %v23 = vld [vmem:[%s1 + $0x8] sm:$0xff]
    %v24 = vld [vmem:[%s1 + $0x10] sm:$0xff]
    %v25 = vld [vmem:[%s1 + $0x18] sm:$0xff]
    %v26 = vld [vmem:[%s1 + $0x20] sm:$0xff]
    %v27 = vld [vmem:[%s1 + $0x28] sm:$0xff]
    %v28 = vld [vmem:[%s1 + $0x30] sm:$0xff]
    %v29 = vld [vmem:[%s1 + $0x38] sm:$0xff]
    %v30 = vld [vmem:[%s1 + $0x40] sm:$0xff]
    %v31 = vld [vmem:[%s1 + $0x48] sm:$0xff]
    %v32 = vld [vmem:[%s1 + $0x50] sm:$0xff]
    %v33 = vld [vmem:[%s1 + $0x58] sm:$0xff]
    %v34 = vld [vmem:[%s1 + $0x60] sm:$0xff]
    %v35 = vld [vmem:[%s2] sm:$0xff]
    %v36 = vld [vmem:[%s2 + $0x8] sm:$0xff]
    %v37 = vld [vmem:[%s2 + $0x10] sm:$0xff]
    %v38 = vld [vmem:[%s2 + $0x18] sm:$0xff]
    %v39 = vld [vmem:[%s2 + $0x20] sm:$0xff]
    %v40 = vld [vmem:[%s2 + $0x28] sm:$0xff]
    %v41 = vld [vmem:[%s2 + $0x30] sm:$0xff]
    %v42 = vld [vmem:[%s2 + $0x38] sm:$0xff]
    %v43 = vld [vmem:[%s2 + $0x40] sm:$0xff]
    %v44 = vld [vmem:[%s2 + $0x48] sm:$0xff]
    %v45 = vld [vmem:[%s2 + $0x50] sm:$0xff]
    %v46 = vld [vmem:[%s2 + $0x58] sm:$0xff]
    %v47 = vld [vmem:[%s2 + $0x60] sm:$0xff]
    %v48 = vld [vmem:[%s3] sm:$0xff]
    %v49 = vld [vmem:[%s3 + $0x8] sm:$0xff]
    %v50 = vld [vmem:[%s3 + $0x10] sm:$0xff]
    %v51 = vld [vmem:[%s3 + $0x18] sm:$0xff]
    %v52 = vld [vmem:[%s3 + $0x20] sm:$0xff]
    %v53 = vld [vmem:[%s3 + $0x28] sm:$0xff]
    %v54 = vld [vmem:[%s3 + $0x30] sm:$0xff]
    %v55 = vld [vmem:[%s3 + $0x38] sm:$0xff]
    %v56 = vld [vmem:[%s3 + $0x40] sm:$0xff]
    %v57 = vld [vmem:[%s3 + $0x48] sm:$0xff]
    %v58 = vld [vmem:[%s3 + $0x50] sm:$0xff]
    %v59 = vld [vmem:[%s3 + $0x58] sm:$0xff]
    %v60 = vld [vmem:[%s3 + $0x60] sm:$0xff]
    %s61 = sld [smem:[#allocation2]]
    %v62 = vld [vmem:[%s0] sm:$0x3]
    %64 = vset.pattern.permute.xlu0 0
    %65 = vperm.xlu0 %64, %v22
    %v66 = vpop.permute.xlu0 %65
    %69 = vset.pattern.permute.xlu0 0
    %70 = vperm.xlu0 %69, %v23
    %v71 = vpop.permute.xlu0 %70
    %74 = vset.pattern.permute.xlu0 0
    %75 = vperm.xlu0 %74, %v24
    %v76 = vpop.permute.xlu0 %75
    %79 = vset.pattern.permute.xlu0 0
    %80 = vperm.xlu0 %79, %v25
    %v81 = vpop.permute.xlu0 %80
    %84 = vset.pattern.permute.xlu0 0
    %85 = vperm.xlu0 %84, %v26
    %v86 = vpop.permute.xlu0 %85
    %89 = vset.pattern.permute.xlu0 0
    %90 = vperm.xlu0 %89, %v27
    %v91 = vpop.permute.xlu0 %90
    %94 = vset.pattern.permute.xlu0 0
    %95 = vperm.xlu0 %94, %v28
    %v96 = vpop.permute.xlu0 %95
    %99 = vset.pattern.permute.xlu0 0
    %100 = vperm.xlu0 %99, %v29
    %v101 = vpop.permute.xlu0 %100
    %104 = vset.pattern.permute.xlu0 0
    %105 = vperm.xlu0 %104, %v30
    %v106 = vpop.permute.xlu0 %105
    %109 = vset.pattern.permute.xlu0 0
    %110 = vperm.xlu0 %109, %v31
    %v111 = vpop.permute.xlu0 %110
    %114 = vset.pattern.permute.xlu0 0
    %115 = vperm.xlu0 %114, %v32
    %v116 = vpop.permute.xlu0 %115
    %119 = vset.pattern.permute.xlu0 0
    %120 = vperm.xlu0 %119, %v33
    %v121 = vpop.permute.xlu0 %120
    %124 = vset.pattern.permute.xlu0 0
    %125 = vperm.xlu0 %124, %v34
    %v126 = vpop.permute.xlu0 %125
    %v129 = vperm.slane %v62, 0
    %v130 = vperm.slane %v62, 1
    %v133 = vmul.f32 %v66, %v129
    %v134 = vmul.f32 %v66, %v130
    %v135 = vmul.f32 %v71, %v129
    %v136 = vmul.f32 %v71, %v130
    %v137 = vmul.f32 %v76, %v129
    %v138 = vmul.f32 %v76, %v130
    %v139 = vmul.f32 %v81, %v129
    %v140 = vmul.f32 %v81, %v130
    %v141 = vmul.f32 %v86, %v129
    %v142 = vmul.f32 %v86, %v130
    %v143 = vmul.f32 %v91, %v129
    %v144 = vmul.f32 %v91, %v130
    %v145 = vmul.f32 %v96, %v129
    %v146 = vmul.f32 %v96, %v130
    %v147 = vmul.f32 %v101, %v129
    %v148 = vmul.f32 %v101, %v130
    %v149 = vmul.f32 %v106, %v129
    %v150 = vmul.f32 %v106, %v130
    %v151 = vmul.f32 %v111, %v129
    %v152 = vmul.f32 %v111, %v130
    %v153 = vmul.f32 %v116, %v129
    %v154 = vmul.f32 %v116, %v130
    %v155 = vmul.f32 %v121, %v129
    %v156 = vmul.f32 %v121, %v130
    %v157 = vmul.f32 %v126, %v129
    %v158 = vmul.f32 %v126, %v130
    %160 = vset.pattern.permute.xlu0 0
    %161 = vperm.xlu0 %160, %v35
    %v162 = vpop.permute.xlu0 %161
    %165 = vset.pattern.permute.xlu0 0
    %166 = vperm.xlu0 %165, %v36
    %v167 = vpop.permute.xlu0 %166
    %170 = vset.pattern.permute.xlu0 0
    %171 = vperm.xlu0 %170, %v37
    %v172 = vpop.permute.xlu0 %171
    %175 = vset.pattern.permute.xlu0 0
    %176 = vperm.xlu0 %175, %v38
    %v177 = vpop.permute.xlu0 %176
    %180 = vset.pattern.permute.xlu0 0
    %181 = vperm.xlu0 %180, %v39
    %v182 = vpop.permute.xlu0 %181
    %185 = vset.pattern.permute.xlu0 0
    %186 = vperm.xlu0 %185, %v40
    %v187 = vpop.permute.xlu0 %186
    %190 = vset.pattern.permute.xlu0 0
    %191 = vperm.xlu0 %190, %v41
    %v192 = vpop.permute.xlu0 %191
    %195 = vset.pattern.permute.xlu0 0
    %196 = vperm.xlu0 %195, %v42
    %v197 = vpop.permute.xlu0 %196
    %200 = vset.pattern.permute.xlu0 0
    %201 = vperm.xlu0 %200, %v43
    %v202 = vpop.permute.xlu0 %201
    %205 = vset.pattern.permute.xlu0 0
    %206 = vperm.xlu0 %205, %v44
    %v207 = vpop.permute.xlu0 %206
    %210 = vset.pattern.permute.xlu0 0
    %211 = vperm.xlu0 %210, %v45
    %v212 = vpop.permute.xlu0 %211
    %215 = vset.pattern.permute.xlu0 0
    %216 = vperm.xlu0 %215, %v46
    %v217 = vpop.permute.xlu0 %216
    %220 = vset.pattern.permute.xlu0 0
    %221 = vperm.xlu0 %220, %v47
    %v222 = vpop.permute.xlu0 %221
    %v224 = vadd.f32 %v133, %v162
    %v225 = vadd.f32 %v134, %v162
    %v226 = vadd.f32 %v135, %v167
    %v227 = vadd.f32 %v136, %v167
    %v228 = vadd.f32 %v137, %v172
    %v229 = vadd.f32 %v138, %v172
    %v230 = vadd.f32 %v139, %v177
    %v231 = vadd.f32 %v140, %v177
    %v232 = vadd.f32 %v141, %v182
    %v233 = vadd.f32 %v142, %v182
    %v234 = vadd.f32 %v143, %v187
    %v235 = vadd.f32 %v144, %v187
    %v236 = vadd.f32 %v145, %v192
    %v237 = vadd.f32 %v146, %v192
    %v238 = vadd.f32 %v147, %v197
    %v239 = vadd.f32 %v148, %v197
    %v240 = vadd.f32 %v149, %v202
    %v241 = vadd.f32 %v150, %v202
    %v242 = vadd.f32 %v151, %v207
    %v243 = vadd.f32 %v152, %v207
    %v244 = vadd.f32 %v153, %v212
    %v245 = vadd.f32 %v154, %v212
    %v246 = vadd.f32 %v155, %v217
    %v247 = vadd.f32 %v156, %v217
    %v248 = vadd.f32 %v157, %v222
    %v249 = vadd.f32 %v158, %v222
    %v250 = vtanh.pop %v224
    %v251 = vtanh.pop %v225
    %v252 = vtanh.pop %v226
    %v253 = vtanh.pop %v227
    %v254 = vtanh.pop %v228
    %v255 = vtanh.pop %v229
    %v256 = vtanh.pop %v230
    %v257 = vtanh.pop %v231
    %v258 = vtanh.pop %v232
    %v259 = vtanh.pop %v233
    %v260 = vtanh.pop %v234
    %v261 = vtanh.pop %v235
    %v262 = vtanh.pop %v236
    %v263 = vtanh.pop %v237
    %v264 = vtanh.pop %v238
    %v265 = vtanh.pop %v239
    %v266 = vtanh.pop %v240
    %v267 = vtanh.pop %v241
    %v268 = vtanh.pop %v242
    %v269 = vtanh.pop %v243
    %v270 = vtanh.pop %v244
    %v271 = vtanh.pop %v245
    %v272 = vtanh.pop %v246
    %v273 = vtanh.pop %v247
    %v274 = vtanh.pop %v248
    %v275 = vtanh.pop %v249
    %277 = vset.pattern.permute.xlu0 0
    %278 = vperm.xlu0 %277, %v48
    %v279 = vpop.permute.xlu0 %278
    %282 = vset.pattern.permute.xlu0 0
    %283 = vperm.xlu0 %282, %v49
    %v284 = vpop.permute.xlu0 %283
    %287 = vset.pattern.permute.xlu0 0
    %288 = vperm.xlu0 %287, %v50
    %v289 = vpop.permute.xlu0 %288
    %292 = vset.pattern.permute.xlu0 0
    %293 = vperm.xlu0 %292, %v51
    %v294 = vpop.permute.xlu0 %293
    %297 = vset.pattern.permute.xlu0 0
    %298 = vperm.xlu0 %297, %v52
    %v299 = vpop.permute.xlu0 %298
    %302 = vset.pattern.permute.xlu0 0
    %303 = vperm.xlu0 %302, %v53
    %v304 = vpop.permute.xlu0 %303
    %307 = vset.pattern.permute.xlu0 0
    %308 = vperm.xlu0 %307, %v54
    %v309 = vpop.permute.xlu0 %308
    %312 = vset.pattern.permute.xlu0 0
    %313 = vperm.xlu0 %312, %v55
    %v314 = vpop.permute.xlu0 %313
    %317 = vset.pattern.permute.xlu0 0
    %318 = vperm.xlu0 %317, %v56
    %v319 = vpop.permute.xlu0 %318
    %322 = vset.pattern.permute.xlu0 0
    %323 = vperm.xlu0 %322, %v57
    %v324 = vpop.permute.xlu0 %323
    %327 = vset.pattern.permute.xlu0 0
    %328 = vperm.xlu0 %327, %v58
    %v329 = vpop.permute.xlu0 %328
    %332 = vset.pattern.permute.xlu0 0
    %333 = vperm.xlu0 %332, %v59
    %v334 = vpop.permute.xlu0 %333
    %337 = vset.pattern.permute.xlu0 0
    %338 = vperm.xlu0 %337, %v60
    %v339 = vpop.permute.xlu0 %338
    %v341 = vmul.f32 %v250, %v279
    %v342 = vmul.f32 %v251, %v279
    %v343 = vmul.f32 %v252, %v284
    %v344 = vmul.f32 %v253, %v284
    %v345 = vmul.f32 %v254, %v289
    %v346 = vmul.f32 %v255, %v289
    %v347 = vmul.f32 %v256, %v294
    %v348 = vmul.f32 %v257, %v294
    %v349 = vmul.f32 %v258, %v299
    %v350 = vmul.f32 %v259, %v299
    %v351 = vmul.f32 %v260, %v304
    %v352 = vmul.f32 %v261, %v304
    %v353 = vmul.f32 %v262, %v309
    %v354 = vmul.f32 %v263, %v309
    %v355 = vmul.f32 %v264, %v314
    %v356 = vmul.f32 %v265, %v314
    %v357 = vmul.f32 %v266, %v319
    %v358 = vmul.f32 %v267, %v319
    %v359 = vmul.f32 %v268, %v324
    %v360 = vmul.f32 %v269, %v324
    %v361 = vmul.f32 %v270, %v329
    %v362 = vmul.f32 %v271, %v329
    %v363 = vmul.f32 %v272, %v334
    %v364 = vmul.f32 %v273, %v334
    %v365 = vmul.f32 %v274, %v339
    %v366 = vmul.f32 %v275, %v339
    %v367 = vadd.f32 %v341, %v343
    %v368 = vadd.f32 %v367, %v345
    %v369 = vadd.f32 %v368, %v347
    %v370 = vadd.f32 %v369, %v349
    %v371 = vadd.f32 %v370, %v351
    %v372 = vadd.f32 %v371, %v353
    %v373 = vadd.f32 %v372, %v355
    %v374 = vadd.f32 %v373, %v357
    %v375 = vadd.f32 %v374, %v359
    %v376 = vadd.f32 %v375, %v361
    %v377 = vadd.f32 %v376, %v363
    %v378 = vadd.f32 %v377, %v365
    %v379 = vrot.slane %v378, 4
    %v380 = vadd.f32 %v378, %v379
    %v381 = vrot.slane %v380, 2
    %v382 = vadd.f32 %v380, %v381
    %v383 = vrot.slane %v382, 1
    %v384 = vadd.f32 %v382, %v383
    %v385 = vadd.f32 %v342, %v344
    %v386 = vadd.f32 %v385, %v346
    %v387 = vadd.f32 %v386, %v348
    %v388 = vadd.f32 %v387, %v350
    %v389 = vadd.f32 %v388, %v352
    %v390 = vadd.f32 %v389, %v354
    %v391 = vadd.f32 %v390, %v356
    %v392 = vadd.f32 %v391, %v358
    %v393 = vadd.f32 %v392, %v360
    %v394 = vadd.f32 %v393, %v362
    %v395 = vadd.f32 %v394, %v364
    %v396 = vadd.f32 %v395, %v366
    %v397 = vrot.slane %v396, 4
    %v398 = vadd.f32 %v396, %v397
    %v399 = vrot.slane %v398, 2
    %v400 = vadd.f32 %v398, %v399
    %v401 = vrot.slane %v400, 1
    %v402 = vadd.f32 %v400, %v401
    %v403 = vstv %s61
    %v404 = vadd.f32 %v384, %v403
    %v405 = vadd.f32 %v402, %v403
    %v408 = vrot.slane %v405, 7
    %vm409 = vcmask 1040384
    %v410 = vsel %vm409, %v404, %v408
    %v412 = vlaneseq
    %vm413 = vcmp.ge.s32.totalorder %v412, 0
    %vm414 = vcmp.lt.s32.totalorder %v412, 256
    %vm415 = vmand %vm413, %vm414
    %416 = vst.msk [vmem:[#allocation3] sm:$0x3] %vm415, %v410
    // Predicated region
    $region22: #{tpu_custom_call.1} parent=1 // pred_check
      _
    $region23: #{tpu_custom_call.1} parent=1 // pred_check_branch
      %418 = sbr.rel (0) target = $region25
    $region24: #{tpu_custom_call.1} parent=1 // pred_region
      %420 = vsyncadd [#allocation4], 16
      %s422 = sshll.u32 [#allocation3], 4
      %s423 = int_to_ptr.vmem [resolvable:$true] %s422
      %s424 = sshll.u32 %s5, 4
      %s425 = int_to_ptr.hbm [resolvable:$true] %s424
      %427 = dma.vmem_to_hbm [thread:$0]  %s423, 16, %s425, [#allocation4]
    $region25: #{tpu_custom_call.1} parent=1 // pred_fallthru
      _
    // Predicated region
    $region26: #{tpu_custom_call.1} parent=1 // pred_check
      _
    $region27: #{tpu_custom_call.1} parent=1 // pred_check_branch
      %429 = sbr.rel (0) target = $region29
    $region28: #{tpu_custom_call.1} parent=1 // pred_region
      %431 = dma.done [#allocation4], 32
    $region29: #{tpu_custom_call.1} parent=1 // pred_fallthru
      _
    %432 = vsyncpa [#allocation4], 1

</llo_original>
